<compile_context>
chip_gen: v5e
topology: v5e:2x2
jax: 0.10.0
libtpu: 0.0.40
codegen_flags: <defaults>
</compile_context>

<pallas_src>
import math
from functools import partial

import jax
import jax.numpy as jnp
from jax import lax
from jax.experimental import pallas as pl
from jax.experimental.pallas import tpu as pltpu  # noqa: F401  (TPU backend)

# torch.finfo(torch.float32).eps — the default eps used by F.rms_norm
RMS_EPS = 1.1920928955078125e-07


def _rms_norm(x, eps=RMS_EPS):
    # x: (..., D); normalize over the last dim (matches F.rms_norm, no weight)
    ms = jnp.mean(x * x, axis=-1, keepdims=True)
    return x * lax.rsqrt(ms + eps)


def block_kernel(x_ref, wqkv_ref, wo_ref, wfc_ref, wpr_ref,
                 cos_q_ref, sin_q_ref, cos_k_ref, sin_k_ref, o_ref,
                 *, B, T, n_head, head_dim):
    H, D = n_head, head_dim
    C = H * D
    bf = jnp.bfloat16

    x = x_ref[...]                                     # (B*T, C) f32

    # ---------------- attention branch ----------------
    xn = _rms_norm(x)                                  # pre-norm, f32
    xb = xn.astype(bf)                                 # bf16 operands for MXU

    # fused qkv projection: ONE matmul, f32 accumulation
    qkv = jnp.dot(xb, wqkv_ref[...],
                  preferred_element_type=jnp.float32)  # (B*T, 3C) f32

    # rotary tables (q tables carry the folded 1/sqrt(D) scale)
    cq = cos_q_ref[...][None]                          # (1, T, D//2)
    sq = sin_q_ref[...][None]
    ck = cos_k_ref[...][None]
    sk = sin_k_ref[...][None]

    # causal mask, built once
    row = lax.broadcasted_iota(jnp.int32, (T, T), 0)
    col = lax.broadcasted_iota(jnp.int32, (T, T), 1)
    causal = (row >= col)[None]                        # (1, T, T)

    def rope(t, c, s):                                 # t: (B, T, D), f32 math
        t1 = t[..., :D // 2]
        t2 = t[..., D // 2:]
        return jnp.concatenate([t1 * c + t2 * s, t2 * c - t1 * s], axis=-1)

    # heads processed as B-batched rank-3 einsums; output projection is
    # accumulated per head directly in vregs (no scratch, no scatter stores).
    attn = jnp.zeros((B * T, C), dtype=jnp.float32)
    for h in range(H):                                 # H is small & static
        qh = qkv[:, h * D:(h + 1) * D].reshape(B, T, D)            # (B, T, D)
        kh = qkv[:, C + h * D:C + (h + 1) * D].reshape(B, T, D)
        vh = qkv[:, 2 * C + h * D:2 * C + (h + 1) * D].reshape(B, T, D)

        qh = rope(_rms_norm(qh), cq, sq)               # qk-RMSNorm + rotary
        kh = rope(_rms_norm(kh), ck, sk)               # (1/sqrt(D) folded in q)

        s = jnp.einsum('btd,bsd->bts', qh.astype(bf), kh.astype(bf),
                       preferred_element_type=jnp.float32)          # (B, T, T)
        s = jnp.where(causal, s, jnp.float32(-1e30))   # finite mask (pad-safe)

        m = jnp.max(s, axis=-1, keepdims=True)
        e = jnp.exp(s - m)
        denom = jnp.sum(e, axis=-1, keepdims=True)
        p = e * pl.reciprocal(denom, approx=True)      # EUP reciprocal

        yh = jnp.einsum('bts,bsd->btd', p.astype(bf), vh.astype(bf),
                        preferred_element_type=jnp.float32)         # (B, T, D)

        wo_h = wo_ref[h * D:(h + 1) * D, :]            # (D, C) bf16 row block
        attn = attn + jnp.dot(yh.reshape(B * T, D).astype(bf), wo_h,
                              preferred_element_type=jnp.float32)

    x = x + attn                                       # first residual (f32)

    # ---------------- MLP branch ----------------
    hn = _rms_norm(x)
    hf = jnp.dot(hn.astype(bf), wfc_ref[...],
                 preferred_element_type=jnp.float32)   # (B*T, 4C), lane-dense
    hf = jnp.square(jnp.maximum(hf, 0.0))              # relu(x)^2 in f32
    hp = jnp.dot(hf.astype(bf), wpr_ref[...],
                 preferred_element_type=jnp.float32)
    o_ref[...] = x + hp                                # second residual


def prepare_block_params(wq, wk, wv, wo, wfc, wpr, cos, sin, *, n_head):
    """One-time parameter prep (bf16 casts, QKV fusion, rope-scale folding)."""
    bf = jnp.bfloat16
    C = wq.shape[0]
    D = C // n_head
    scale = 1.0 / math.sqrt(D)
    f32 = jnp.float32
    return dict(
        wqkv=jnp.concatenate([wq, wk, wv], axis=1).astype(bf),   # (C, 3C)
        wo=wo.astype(bf),                                        # (C, C)
        wfc=wfc.astype(bf),                                      # (C, 4C)
        wpr=wpr.astype(bf),                                      # (4C, C)
        cos_q=(cos * scale).astype(f32),                         # (T, D//2)
        sin_q=(sin * scale).astype(f32),
        cos_k=cos.astype(f32),
        sin_k=sin.astype(f32),
    )


def block_forward(x, params, *, n_head):
    B, T, C = x.shape
    D = C // n_head
    kernel = partial(block_kernel, B=B, T=T, n_head=n_head, head_dim=D)
    # No grid: the whole (tiny) problem is one invocation; inputs/outputs are
    # full-array VMEM refs.
    out = pl.pallas_call(
        kernel,
        out_shape=jax.ShapeDtypeStruct((B * T, C), jnp.float32),
    )(x.reshape(B * T, C),
      params['wqkv'], params['wo'], params['wfc'], params['wpr'],
      params['cos_q'], params['sin_q'], params['cos_k'], params['sin_k'])
    return out.reshape(B, T, C)


# ----------------- pure-JAX reference (for validation) -----------------
def ref_block(x, wq, wk, wv, wo, wfc, wpr, cos, sin, *, n_head):
    B, T, C = x.shape
    D = C // n_head
    xn = _rms_norm(x)
    q = (xn @ wq).reshape(B, T, n_head, D)
    k = (xn @ wk).reshape(B, T, n_head, D)
    v = (xn @ wv).reshape(B, T, n_head, D)
    q, k = _rms_norm(q), _rms_norm(k)

    c = cos[None, :, None, :]
    s = sin[None, :, None, :]

    def rope(t):
        t1, t2 = t[..., : D // 2], t[..., D // 2:]
        return jnp.concatenate([t1 * c + t2 * s, -t1 * s + t2 * c], axis=-1)

    q, k = rope(q), rope(k)
    scores = jnp.einsum("bqhd,bkhd->bhqk", q, k) / math.sqrt(D)
    mask = jnp.tril(jnp.ones((T, T), dtype=bool))
    scores = jnp.where(mask, scores, -jnp.inf)
    probs = jax.nn.softmax(scores, axis=-1)
    y = jnp.einsum("bhqk,bkhd->bqhd", probs, v).reshape(B, T, C)
    x = x + y @ wo
    hn = _rms_norm(x)
    hf = jnp.square(jnp.maximum(hn @ wfc, 0.0))
    return x + hf @ wpr


if __name__ == "__main__":
    # small shapes implied by the module: B=2, T=8 (seq), n_embd=32, n_head=2
    B, T, C, n_head = 2, 8, 32, 2
    D = C // n_head

    key = jax.random.PRNGKey(0)
    kx, k1, k2, k3, k4, k5, k6 = jax.random.split(key, 7)
    x = jax.random.normal(kx, (B, T, C), dtype=jnp.float32)

    # nn.Linear weights are (out, in); we use (in, out) matrices directly.
    # NOTE: the PyTorch module zero-inits c_proj weights (attn & mlp); we use
    # small random values instead so the kernel path is actually exercised —
    # forward semantics are identical.
    def w(k, shape):
        return 0.02 * jax.random.normal(k, shape, dtype=jnp.float32)

    wq = w(k1, (C, C))
    wk = w(k2, (C, C))
    wv = w(k3, (C, C))
    wo = w(k4, (C, C))
    wfc = w(k5, (C, 4 * C))
    wpr = w(k6, (4 * C, C))

    # Rotary cache, matching the PyTorch Rotary module (bf16 round-trip)
    inv_freq = 1.0 / (10000.0 ** (jnp.arange(0, D, 2, dtype=jnp.float32) / D))
    t = jnp.arange(T, dtype=jnp.float32)
    freqs = jnp.outer(t, inv_freq)                       # (T, D//2)
    cos = jnp.cos(freqs).astype(jnp.bfloat16).astype(jnp.float32)
    sin = jnp.sin(freqs).astype(jnp.bfloat16).astype(jnp.float32)

    # one-time parameter prep (bf16 casts, wqkv fusion, rope-scale folding)
    params = prepare_block_params(wq, wk, wv, wo, wfc, wpr, cos, sin,
                                  n_head=n_head)

    out = block_forward(x, params, n_head=n_head)
    out = jax.block_until_ready(out)

    ref = ref_block(x, wq, wk, wv, wo, wfc, wpr, cos, sin, n_head=n_head)
    assert out.shape == (B, T, C)
    # kernel uses bf16 MXU operands (f32 accumulation) + approx reciprocal in
    # the softmax; reference is pure f32, so allow a few e-4 of rounding.
    max_err = float(jnp.max(jnp.abs(out - ref)))
    assert jnp.allclose(out, ref, atol=3e-3, rtol=3e-3), max_err
    print("KERNEL_OK")
</pallas_src>

<mosaic_0001>
module attributes {stable_mosaic.version = 11 : i64} {
  func.func @block_kernel(%arg0: memref<16x32xf32, #tpu.memory_space<vmem>>, %arg1: memref<32x96xbf16, #tpu.memory_space<vmem>>, %arg2: memref<32x32xbf16, #tpu.memory_space<vmem>>, %arg3: memref<32x128xbf16, #tpu.memory_space<vmem>>, %arg4: memref<128x32xbf16, #tpu.memory_space<vmem>>, %arg5: memref<8x8xf32, #tpu.memory_space<vmem>>, %arg6: memref<8x8xf32, #tpu.memory_space<vmem>>, %arg7: memref<8x8xf32, #tpu.memory_space<vmem>>, %arg8: memref<8x8xf32, #tpu.memory_space<vmem>>, %arg9: memref<16x32xf32, #tpu.memory_space<vmem>>) attributes {dimension_semantics = [], scalar_prefetch = 0 : i64, scratch_operands = 0 : i64, tpu.core_type = #tpu.core_type<tc>} {
    %c0 = arith.constant 0 : index
    %c0_0 = arith.constant 0 : index
    %0 = vector.load %arg0[%c0, %c0_0] : memref<16x32xf32, #tpu.memory_space<vmem>>, vector<16x32xf32>
    %1 = arith.mulf %0, %0 : vector<16x32xf32>
    %cst = arith.constant dense<0.000000e+00> : vector<16xf32>
    %2 = vector.multi_reduction <add>, %1, %cst [1] : vector<16x32xf32> to vector<16xf32>
    %3 = vector.shape_cast %2 : vector<16xf32> to vector<16x1xf32>
    %cst_1 = arith.constant 3.200000e+01 : f32
    %4 = vector.broadcast %cst_1 : f32 to vector<16x1xf32>
    %5 = arith.divf %3, %4 : vector<16x1xf32>
    %cst_2 = arith.constant 1.1920929E-7 : f32
    %6 = vector.broadcast %cst_2 : f32 to vector<16x1xf32>
    %7 = arith.addf %5, %6 : vector<16x1xf32>
    %8 = math.rsqrt %7 : vector<16x1xf32>
    %9 = vector.broadcast %8 : vector<16x1xf32> to vector<16x32xf32>
    %10 = arith.mulf %0, %9 : vector<16x32xf32>
    %11 = arith.truncf %10 : vector<16x32xf32> to vector<16x32xbf16>
    %c0_3 = arith.constant 0 : index
    %c0_4 = arith.constant 0 : index
    %12 = vector.load %arg1[%c0_3, %c0_4] : memref<32x96xbf16, #tpu.memory_space<vmem>>, vector<32x96xbf16>
    %cst_5 = arith.constant dense<0.000000e+00> : vector<16x96xf32>
    %13 = tpu.matmul %11, %12, %cst_5 {dimension_numbers = #tpu.dot_dimension_numbers<[1], [0], [0], [1], [0, 0, 1, 1], [], []>} : vector<16x32xbf16>, vector<32x96xbf16>, vector<16x96xf32> -> vector<16x96xf32>
    %c0_6 = arith.constant 0 : index
    %c0_7 = arith.constant 0 : index
    %14 = vector.load %arg5[%c0_6, %c0_7] : memref<8x8xf32, #tpu.memory_space<vmem>>, vector<8x8xf32>
    %15 = vector.shape_cast %14 : vector<8x8xf32> to vector<1x8x8xf32>
    %c0_8 = arith.constant 0 : index
    %c0_9 = arith.constant 0 : index
    %16 = vector.load %arg6[%c0_8, %c0_9] : memref<8x8xf32, #tpu.memory_space<vmem>>, vector<8x8xf32>
    %17 = vector.shape_cast %16 : vector<8x8xf32> to vector<1x8x8xf32>
    %c0_10 = arith.constant 0 : index
    %c0_11 = arith.constant 0 : index
    %18 = vector.load %arg7[%c0_10, %c0_11] : memref<8x8xf32, #tpu.memory_space<vmem>>, vector<8x8xf32>
    %19 = vector.shape_cast %18 : vector<8x8xf32> to vector<1x8x8xf32>
    %c0_12 = arith.constant 0 : index
    %c0_13 = arith.constant 0 : index
    %20 = vector.load %arg8[%c0_12, %c0_13] : memref<8x8xf32, #tpu.memory_space<vmem>>, vector<8x8xf32>
    %21 = vector.shape_cast %20 : vector<8x8xf32> to vector<1x8x8xf32>
    %22 = tpu.iota {dimensions = array<i32: 0>} : vector<8x8xi32>
    %23 = tpu.iota {dimensions = array<i32: 1>} : vector<8x8xi32>
    %24 = arith.cmpi sge, %22, %23 : vector<8x8xi32>
    %25 = vector.shape_cast %24 : vector<8x8xi1> to vector<1x8x8xi1>
    %cst_14 = arith.constant 0.000000e+00 : f32
    %26 = vector.broadcast %cst_14 : f32 to vector<16x32xf32>
    %27 = vector.extract_strided_slice %13 {offsets = [0, 0], sizes = [16, 16], strides = [1, 1]} : vector<16x96xf32> to vector<16x16xf32>
    %28 = vector.shape_cast %27 : vector<16x16xf32> to vector<2x8x16xf32>
    %29 = vector.extract_strided_slice %13 {offsets = [0, 32], sizes = [16, 16], strides = [1, 1]} : vector<16x96xf32> to vector<16x16xf32>
    %30 = vector.shape_cast %29 : vector<16x16xf32> to vector<2x8x16xf32>
    %31 = vector.extract_strided_slice %13 {offsets = [0, 64], sizes = [16, 16], strides = [1, 1]} : vector<16x96xf32> to vector<16x16xf32>
    %32 = vector.shape_cast %31 : vector<16x16xf32> to vector<2x8x16xf32>
    %33 = arith.mulf %28, %28 : vector<2x8x16xf32>
    %cst_15 = arith.constant dense<0.000000e+00> : vector<2x8xf32>
    %34 = vector.multi_reduction <add>, %33, %cst_15 [2] : vector<2x8x16xf32> to vector<2x8xf32>
    %35 = vector.shape_cast %34 : vector<2x8xf32> to vector<2x8x1xf32>
    %cst_16 = arith.constant 1.600000e+01 : f32
    %36 = vector.broadcast %cst_16 : f32 to vector<2x8x1xf32>
    %37 = arith.divf %35, %36 : vector<2x8x1xf32>
    %cst_17 = arith.constant 1.1920929E-7 : f32
    %38 = vector.broadcast %cst_17 : f32 to vector<2x8x1xf32>
    %39 = arith.addf %37, %38 : vector<2x8x1xf32>
    %40 = math.rsqrt %39 : vector<2x8x1xf32>
    %41 = vector.broadcast %40 : vector<2x8x1xf32> to vector<2x8x16xf32>
    %42 = arith.mulf %28, %41 : vector<2x8x16xf32>
    %43 = vector.extract_strided_slice %42 {offsets = [0, 0, 0], sizes = [2, 8, 8], strides = [1, 1, 1]} : vector<2x8x16xf32> to vector<2x8x8xf32>
    %44 = vector.extract_strided_slice %42 {offsets = [0, 0, 8], sizes = [2, 8, 8], strides = [1, 1, 1]} : vector<2x8x16xf32> to vector<2x8x8xf32>
    %45 = vector.broadcast %15 : vector<1x8x8xf32> to vector<2x8x8xf32>
    %46 = arith.mulf %43, %45 : vector<2x8x8xf32>
    %47 = vector.broadcast %17 : vector<1x8x8xf32> to vector<2x8x8xf32>
    %48 = arith.mulf %44, %47 : vector<2x8x8xf32>
    %49 = arith.addf %46, %48 : vector<2x8x8xf32>
    %50 = vector.broadcast %15 : vector<1x8x8xf32> to vector<2x8x8xf32>
    %51 = arith.mulf %44, %50 : vector<2x8x8xf32>
    %52 = vector.broadcast %17 : vector<1x8x8xf32> to vector<2x8x8xf32>
    %53 = arith.mulf %43, %52 : vector<2x8x8xf32>
    %54 = arith.subf %51, %53 : vector<2x8x8xf32>
    %55 = tpu.concatenate %49, %54 in 2 : vector<2x8x8xf32>, vector<2x8x8xf32> -> vector<2x8x16xf32>
    %56 = arith.mulf %30, %30 : vector<2x8x16xf32>
    %cst_18 = arith.constant dense<0.000000e+00> : vector<2x8xf32>
    %57 = vector.multi_reduction <add>, %56, %cst_18 [2] : vector<2x8x16xf32> to vector<2x8xf32>
    %58 = vector.shape_cast %57 : vector<2x8xf32> to vector<2x8x1xf32>
    %cst_19 = arith.constant 1.600000e+01 : f32
    %59 = vector.broadcast %cst_19 : f32 to vector<2x8x1xf32>
    %60 = arith.divf %58, %59 : vector<2x8x1xf32>
    %cst_20 = arith.constant 1.1920929E-7 : f32
    %61 = vector.broadcast %cst_20 : f32 to vector<2x8x1xf32>
    %62 = arith.addf %60, %61 : vector<2x8x1xf32>
    %63 = math.rsqrt %62 : vector<2x8x1xf32>
    %64 = vector.broadcast %63 : vector<2x8x1xf32> to vector<2x8x16xf32>
    %65 = arith.mulf %30, %64 : vector<2x8x16xf32>
    %66 = vector.extract_strided_slice %65 {offsets = [0, 0, 0], sizes = [2, 8, 8], strides = [1, 1, 1]} : vector<2x8x16xf32> to vector<2x8x8xf32>
    %67 = vector.extract_strided_slice %65 {offsets = [0, 0, 8], sizes = [2, 8, 8], strides = [1, 1, 1]} : vector<2x8x16xf32> to vector<2x8x8xf32>
    %68 = vector.broadcast %19 : vector<1x8x8xf32> to vector<2x8x8xf32>
    %69 = arith.mulf %66, %68 : vector<2x8x8xf32>
    %70 = vector.broadcast %21 : vector<1x8x8xf32> to vector<2x8x8xf32>
    %71 = arith.mulf %67, %70 : vector<2x8x8xf32>
    %72 = arith.addf %69, %71 : vector<2x8x8xf32>
    %73 = vector.broadcast %19 : vector<1x8x8xf32> to vector<2x8x8xf32>
    %74 = arith.mulf %67, %73 : vector<2x8x8xf32>
    %75 = vector.broadcast %21 : vector<1x8x8xf32> to vector<2x8x8xf32>
    %76 = arith.mulf %66, %75 : vector<2x8x8xf32>
    %77 = arith.subf %74, %76 : vector<2x8x8xf32>
    %78 = tpu.concatenate %72, %77 in 2 : vector<2x8x8xf32>, vector<2x8x8xf32> -> vector<2x8x16xf32>
    %79 = arith.truncf %55 : vector<2x8x16xf32> to vector<2x8x16xbf16>
    %80 = arith.truncf %78 : vector<2x8x16xf32> to vector<2x8x16xbf16>
    "tpu.trace_start"() <{level = 10 : i32, message = "btd,bsd->bts"}> : () -> ()
    %cst_21 = arith.constant dense<0.000000e+00> : vector<2x8x8xf32>
    %81 = tpu.matmul %79, %80, %cst_21 {dimension_numbers = #tpu.dot_dimension_numbers<[2], [2], [1], [1], [0, 0, 0, 1, 1, 1], [0], [0]>} : vector<2x8x16xbf16>, vector<2x8x16xbf16>, vector<2x8x8xf32> -> vector<2x8x8xf32>
    %cst_22 = arith.constant -1.000000e+30 : f32
    "tpu.trace_stop"() : () -> ()
    %82 = vector.shape_cast %25 : vector<1x8x8xi1> to vector<1x8x8xi1>
    %83 = vector.broadcast %82 : vector<1x8x8xi1> to vector<2x8x8xi1>
    %84 = vector.broadcast %cst_22 : f32 to vector<2x8x8xf32>
    %85 = arith.select %83, %81, %84 : vector<2x8x8xi1>, vector<2x8x8xf32>
    %cst_23 = arith.constant dense<0xFF800000> : vector<2x8xf32>
    %86 = vector.multi_reduction <maximumf>, %85, %cst_23 [2] : vector<2x8x8xf32> to vector<2x8xf32>
    %87 = vector.shape_cast %86 : vector<2x8xf32> to vector<2x8x1xf32>
    %88 = vector.broadcast %87 : vector<2x8x1xf32> to vector<2x8x8xf32>
    %89 = arith.subf %85, %88 : vector<2x8x8xf32>
    %90 = math.exp %89 : vector<2x8x8xf32>
    %cst_24 = arith.constant dense<0.000000e+00> : vector<2x8xf32>
    %91 = vector.multi_reduction <add>, %90, %cst_24 [2] : vector<2x8x8xf32> to vector<2x8xf32>
    %92 = vector.shape_cast %91 : vector<2x8xf32> to vector<2x8x1xf32>
    %93 = tpu.reciprocal %92 {approx = true} : vector<2x8x1xf32> -> vector<2x8x1xf32>
    %94 = vector.broadcast %93 : vector<2x8x1xf32> to vector<2x8x8xf32>
    %95 = arith.mulf %90, %94 : vector<2x8x8xf32>
    %96 = arith.truncf %95 : vector<2x8x8xf32> to vector<2x8x8xbf16>
    %97 = arith.truncf %32 : vector<2x8x16xf32> to vector<2x8x16xbf16>
    "tpu.trace_start"() <{level = 10 : i32, message = "bts,bsd->btd"}> : () -> ()
    %cst_25 = arith.constant dense<0.000000e+00> : vector<2x8x16xf32>
    %98 = tpu.matmul %96, %97, %cst_25 {dimension_numbers = #tpu.dot_dimension_numbers<[2], [1], [1], [2], [0, 0, 0, 1, 1, 2], [0], [0]>} : vector<2x8x8xbf16>, vector<2x8x16xbf16>, vector<2x8x16xf32> -> vector<2x8x16xf32>
    "tpu.trace_stop"() : () -> ()
    %c0_26 = arith.constant 0 : index
    %c0_27 = arith.constant 0 : index
    %99 = vector.load %arg2[%c0_26, %c0_27] : memref<32x32xbf16, #tpu.memory_space<vmem>>, vector<16x32xbf16>
    %100 = vector.shape_cast %98 : vector<2x8x16xf32> to vector<16x16xf32>
    %101 = arith.truncf %100 : vector<16x16xf32> to vector<16x16xbf16>
    %cst_28 = arith.constant dense<0.000000e+00> : vector<16x32xf32>
    %102 = tpu.matmul %101, %99, %cst_28 {dimension_numbers = #tpu.dot_dimension_numbers<[1], [0], [0], [1], [0, 0, 1, 1], [], []>} : vector<16x16xbf16>, vector<16x32xbf16>, vector<16x32xf32> -> vector<16x32xf32>
    %103 = arith.addf %26, %102 : vector<16x32xf32>
    %104 = vector.extract_strided_slice %13 {offsets = [0, 16], sizes = [16, 16], strides = [1, 1]} : vector<16x96xf32> to vector<16x16xf32>
    %105 = vector.shape_cast %104 : vector<16x16xf32> to vector<2x8x16xf32>
    %106 = vector.extract_strided_slice %13 {offsets = [0, 48], sizes = [16, 16], strides = [1, 1]} : vector<16x96xf32> to vector<16x16xf32>
    %107 = vector.shape_cast %106 : vector<16x16xf32> to vector<2x8x16xf32>
    %108 = vector.extract_strided_slice %13 {offsets = [0, 80], sizes = [16, 16], strides = [1, 1]} : vector<16x96xf32> to vector<16x16xf32>
    %109 = vector.shape_cast %108 : vector<16x16xf32> to vector<2x8x16xf32>
    %110 = arith.mulf %105, %105 : vector<2x8x16xf32>
    %cst_29 = arith.constant dense<0.000000e+00> : vector<2x8xf32>
    %111 = vector.multi_reduction <add>, %110, %cst_29 [2] : vector<2x8x16xf32> to vector<2x8xf32>
    %112 = vector.shape_cast %111 : vector<2x8xf32> to vector<2x8x1xf32>
    %cst_30 = arith.constant 1.600000e+01 : f32
    %113 = vector.broadcast %cst_30 : f32 to vector<2x8x1xf32>
    %114 = arith.divf %112, %113 : vector<2x8x1xf32>
    %cst_31 = arith.constant 1.1920929E-7 : f32
    %115 = vector.broadcast %cst_31 : f32 to vector<2x8x1xf32>
    %116 = arith.addf %114, %115 : vector<2x8x1xf32>
    %117 = math.rsqrt %116 : vector<2x8x1xf32>
    %118 = vector.broadcast %117 : vector<2x8x1xf32> to vector<2x8x16xf32>
    %119 = arith.mulf %105, %118 : vector<2x8x16xf32>
    %120 = vector.extract_strided_slice %119 {offsets = [0, 0, 0], sizes = [2, 8, 8], strides = [1, 1, 1]} : vector<2x8x16xf32> to vector<2x8x8xf32>
    %121 = vector.extract_strided_slice %119 {offsets = [0, 0, 8], sizes = [2, 8, 8], strides = [1, 1, 1]} : vector<2x8x16xf32> to vector<2x8x8xf32>
    %122 = vector.broadcast %15 : vector<1x8x8xf32> to vector<2x8x8xf32>
    %123 = arith.mulf %120, %122 : vector<2x8x8xf32>
    %124 = vector.broadcast %17 : vector<1x8x8xf32> to vector<2x8x8xf32>
    %125 = arith.mulf %121, %124 : vector<2x8x8xf32>
    %126 = arith.addf %123, %125 : vector<2x8x8xf32>
    %127 = vector.broadcast %15 : vector<1x8x8xf32> to vector<2x8x8xf32>
    %128 = arith.mulf %121, %127 : vector<2x8x8xf32>
    %129 = vector.broadcast %17 : vector<1x8x8xf32> to vector<2x8x8xf32>
    %130 = arith.mulf %120, %129 : vector<2x8x8xf32>
    %131 = arith.subf %128, %130 : vector<2x8x8xf32>
    %132 = tpu.concatenate %126, %131 in 2 : vector<2x8x8xf32>, vector<2x8x8xf32> -> vector<2x8x16xf32>
    %133 = arith.mulf %107, %107 : vector<2x8x16xf32>
    %cst_32 = arith.constant dense<0.000000e+00> : vector<2x8xf32>
    %134 = vector.multi_reduction <add>, %133, %cst_32 [2] : vector<2x8x16xf32> to vector<2x8xf32>
    %135 = vector.shape_cast %134 : vector<2x8xf32> to vector<2x8x1xf32>
    %cst_33 = arith.constant 1.600000e+01 : f32
    %136 = vector.broadcast %cst_33 : f32 to vector<2x8x1xf32>
    %137 = arith.divf %135, %136 : vector<2x8x1xf32>
    %cst_34 = arith.constant 1.1920929E-7 : f32
    %138 = vector.broadcast %cst_34 : f32 to vector<2x8x1xf32>
    %139 = arith.addf %137, %138 : vector<2x8x1xf32>
    %140 = math.rsqrt %139 : vector<2x8x1xf32>
    %141 = vector.broadcast %140 : vector<2x8x1xf32> to vector<2x8x16xf32>
    %142 = arith.mulf %107, %141 : vector<2x8x16xf32>
    %143 = vector.extract_strided_slice %142 {offsets = [0, 0, 0], sizes = [2, 8, 8], strides = [1, 1, 1]} : vector<2x8x16xf32> to vector<2x8x8xf32>
    %144 = vector.extract_strided_slice %142 {offsets = [0, 0, 8], sizes = [2, 8, 8], strides = [1, 1, 1]} : vector<2x8x16xf32> to vector<2x8x8xf32>
    %145 = vector.broadcast %19 : vector<1x8x8xf32> to vector<2x8x8xf32>
    %146 = arith.mulf %143, %145 : vector<2x8x8xf32>
    %147 = vector.broadcast %21 : vector<1x8x8xf32> to vector<2x8x8xf32>
    %148 = arith.mulf %144, %147 : vector<2x8x8xf32>
    %149 = arith.addf %146, %148 : vector<2x8x8xf32>
    %150 = vector.broadcast %19 : vector<1x8x8xf32> to vector<2x8x8xf32>
    %151 = arith.mulf %144, %150 : vector<2x8x8xf32>
    %152 = vector.broadcast %21 : vector<1x8x8xf32> to vector<2x8x8xf32>
    %153 = arith.mulf %143, %152 : vector<2x8x8xf32>
    %154 = arith.subf %151, %153 : vector<2x8x8xf32>
    %155 = tpu.concatenate %149, %154 in 2 : vector<2x8x8xf32>, vector<2x8x8xf32> -> vector<2x8x16xf32>
    %156 = arith.truncf %132 : vector<2x8x16xf32> to vector<2x8x16xbf16>
    %157 = arith.truncf %155 : vector<2x8x16xf32> to vector<2x8x16xbf16>
    "tpu.trace_start"() <{level = 10 : i32, message = "btd,bsd->bts"}> : () -> ()
    %cst_35 = arith.constant dense<0.000000e+00> : vector<2x8x8xf32>
    %158 = tpu.matmul %156, %157, %cst_35 {dimension_numbers = #tpu.dot_dimension_numbers<[2], [2], [1], [1], [0, 0, 0, 1, 1, 1], [0], [0]>} : vector<2x8x16xbf16>, vector<2x8x16xbf16>, vector<2x8x8xf32> -> vector<2x8x8xf32>
    %cst_36 = arith.constant -1.000000e+30 : f32
    "tpu.trace_stop"() : () -> ()
    %159 = vector.shape_cast %25 : vector<1x8x8xi1> to vector<1x8x8xi1>
    %160 = vector.broadcast %159 : vector<1x8x8xi1> to vector<2x8x8xi1>
    %161 = vector.broadcast %cst_36 : f32 to vector<2x8x8xf32>
    %162 = arith.select %160, %158, %161 : vector<2x8x8xi1>, vector<2x8x8xf32>
    %cst_37 = arith.constant dense<0xFF800000> : vector<2x8xf32>
    %163 = vector.multi_reduction <maximumf>, %162, %cst_37 [2] : vector<2x8x8xf32> to vector<2x8xf32>
    %164 = vector.shape_cast %163 : vector<2x8xf32> to vector<2x8x1xf32>
    %165 = vector.broadcast %164 : vector<2x8x1xf32> to vector<2x8x8xf32>
    %166 = arith.subf %162, %165 : vector<2x8x8xf32>
    %167 = math.exp %166 : vector<2x8x8xf32>
    %cst_38 = arith.constant dense<0.000000e+00> : vector<2x8xf32>
    %168 = vector.multi_reduction <add>, %167, %cst_38 [2] : vector<2x8x8xf32> to vector<2x8xf32>
    %169 = vector.shape_cast %168 : vector<2x8xf32> to vector<2x8x1xf32>
    %170 = tpu.reciprocal %169 {approx = true} : vector<2x8x1xf32> -> vector<2x8x1xf32>
    %171 = vector.broadcast %170 : vector<2x8x1xf32> to vector<2x8x8xf32>
    %172 = arith.mulf %167, %171 : vector<2x8x8xf32>
    %173 = arith.truncf %172 : vector<2x8x8xf32> to vector<2x8x8xbf16>
    %174 = arith.truncf %109 : vector<2x8x16xf32> to vector<2x8x16xbf16>
    "tpu.trace_start"() <{level = 10 : i32, message = "bts,bsd->btd"}> : () -> ()
    %cst_39 = arith.constant dense<0.000000e+00> : vector<2x8x16xf32>
    %175 = tpu.matmul %173, %174, %cst_39 {dimension_numbers = #tpu.dot_dimension_numbers<[2], [1], [1], [2], [0, 0, 0, 1, 1, 2], [0], [0]>} : vector<2x8x8xbf16>, vector<2x8x16xbf16>, vector<2x8x16xf32> -> vector<2x8x16xf32>
    "tpu.trace_stop"() : () -> ()
    %c16 = arith.constant 16 : index
    %c0_40 = arith.constant 0 : index
    %176 = vector.load %arg2[%c16, %c0_40] : memref<32x32xbf16, #tpu.memory_space<vmem>>, vector<16x32xbf16>
    %177 = vector.shape_cast %175 : vector<2x8x16xf32> to vector<16x16xf32>
    %178 = arith.truncf %177 : vector<16x16xf32> to vector<16x16xbf16>
    %cst_41 = arith.constant dense<0.000000e+00> : vector<16x32xf32>
    %179 = tpu.matmul %178, %176, %cst_41 {dimension_numbers = #tpu.dot_dimension_numbers<[1], [0], [0], [1], [0, 0, 1, 1], [], []>} : vector<16x16xbf16>, vector<16x32xbf16>, vector<16x32xf32> -> vector<16x32xf32>
    %180 = arith.addf %103, %179 : vector<16x32xf32>
    %181 = arith.addf %0, %180 : vector<16x32xf32>
    %182 = arith.mulf %181, %181 : vector<16x32xf32>
    %cst_42 = arith.constant dense<0.000000e+00> : vector<16xf32>
    %183 = vector.multi_reduction <add>, %182, %cst_42 [1] : vector<16x32xf32> to vector<16xf32>
    %184 = vector.shape_cast %183 : vector<16xf32> to vector<16x1xf32>
    %cst_43 = arith.constant 3.200000e+01 : f32
    %185 = vector.broadcast %cst_43 : f32 to vector<16x1xf32>
    %186 = arith.divf %184, %185 : vector<16x1xf32>
    %cst_44 = arith.constant 1.1920929E-7 : f32
    %187 = vector.broadcast %cst_44 : f32 to vector<16x1xf32>
    %188 = arith.addf %186, %187 : vector<16x1xf32>
    %189 = math.rsqrt %188 : vector<16x1xf32>
    %190 = vector.broadcast %189 : vector<16x1xf32> to vector<16x32xf32>
    %191 = arith.mulf %181, %190 : vector<16x32xf32>
    %192 = arith.truncf %191 : vector<16x32xf32> to vector<16x32xbf16>
    %c0_45 = arith.constant 0 : index
    %c0_46 = arith.constant 0 : index
    %193 = vector.load %arg3[%c0_45, %c0_46] : memref<32x128xbf16, #tpu.memory_space<vmem>>, vector<32x128xbf16>
    %cst_47 = arith.constant dense<0.000000e+00> : vector<16x128xf32>
    %194 = tpu.matmul %192, %193, %cst_47 {dimension_numbers = #tpu.dot_dimension_numbers<[1], [0], [0], [1], [0, 0, 1, 1], [], []>} : vector<16x32xbf16>, vector<32x128xbf16>, vector<16x128xf32> -> vector<16x128xf32>
    %cst_48 = arith.constant 0.000000e+00 : f32
    %195 = vector.broadcast %cst_48 : f32 to vector<16x128xf32>
    %196 = arith.maximumf %194, %195 : vector<16x128xf32>
    %197 = arith.mulf %196, %196 : vector<16x128xf32>
    %198 = arith.truncf %197 : vector<16x128xf32> to vector<16x128xbf16>
    %c0_49 = arith.constant 0 : index
    %c0_50 = arith.constant 0 : index
    %199 = vector.load %arg4[%c0_49, %c0_50] : memref<128x32xbf16, #tpu.memory_space<vmem>>, vector<128x32xbf16>
    %cst_51 = arith.constant dense<0.000000e+00> : vector<16x32xf32>
    %200 = tpu.matmul %198, %199, %cst_51 {dimension_numbers = #tpu.dot_dimension_numbers<[1], [0], [0], [1], [0, 0, 1, 1], [], []>} : vector<16x128xbf16>, vector<128x32xbf16>, vector<16x32xf32> -> vector<16x32xf32>
    %201 = arith.addf %181, %200 : vector<16x32xf32>
    %c0_52 = arith.constant 0 : index
    %c0_53 = arith.constant 0 : index
    %202 = vector.load %arg9[%c0_52, %c0_53] : memref<16x32xf32, #tpu.memory_space<vmem>>, vector<16x32xf32>
    tpu.vector_store %arg9[%c0_52, %c0_53], %201 {strides = array<i32>} : memref<16x32xf32, #tpu.memory_space<vmem>>, vector<16x32xf32>,
    return
  }
}

</mosaic_0001>

<llo_original>
// kernel: tpu_custom_call.1
$region0: #{tpu_custom_call.1}
  #allocation0 [shape = 'u32[]', space=smem, size = 0x4, offset = 0x4, fixed_abs, tag = 'smem constant byte address 0x4 - core index']
  #allocation1 [shape = 'u32[72,128]{1,0:T(1,128)}', space=vmem, size = 0x9000, scoped, tag = 'internal scratch']
  %s0 = inlined_call_operand.vmem [shape: f32[16,32], index: 0, kind: input, shape index: {}]
  %s1 = inlined_call_operand.vmem [shape: bf16[32,96], index: 1, kind: input, shape index: {}]
  %s2 = inlined_call_operand.vmem [shape: bf16[32,32], index: 2, kind: input, shape index: {}]
  %s3 = inlined_call_operand.vmem [shape: bf16[32,128], index: 3, kind: input, shape index: {}]
  %s4 = inlined_call_operand.vmem [shape: bf16[128,32], index: 4, kind: input, shape index: {}]
  %s5 = inlined_call_operand.vmem [shape: f32[8,8], index: 5, kind: input, shape index: {}]
  %s6 = inlined_call_operand.vmem [shape: f32[8,8], index: 6, kind: input, shape index: {}]
  %s7 = inlined_call_operand.hbm [shape: f32[8,8], index: 7, kind: input, shape index: {}]
  %s8 = inlined_call_operand.hbm [shape: f32[8,8], index: 8, kind: input, shape index: {}]
  %s9 = inlined_call_operand.hbm [shape: f32[16,32], index: 9, kind: output, shape index: {}]
  %s10 = sld [smem:[#allocation0]]
  $region54: #{tpu_custom_call.1} parent=0
    _
  %s12 = ssub.s32 1, %s10
  %s13 = scalar_select 0, %s12, %s10
  $region1: #{tpu_custom_call.1} parent=0
    #allocation2 [shape = 'u8[4096]{0}', space=vmem, size = 0x1000, scoped, tag = 'input window, operand 7, single buffered']
    #allocation3 [shape = 's32[1]{0}', space=sflag, size = 0x4, scoped, tag = 'scoped memory for tpu_custom_call.1']
    #allocation4 [shape = 's32[1]{0}', space=sflag, size = 0x4, scoped, tag = 'scoped memory for tpu_custom_call.1']
    #allocation5 [shape = 'u8[4096]{0}', space=vmem, size = 0x1000, scoped, tag = 'input window, operand 8, single buffered']
    #allocation6 [shape = 's32[1]{0}', space=sflag, size = 0x4, scoped, tag = 'scoped memory for tpu_custom_call.1']
    #allocation7 [shape = 'u8[8192]{0}', space=vmem, size = 0x2000, scoped, tag = 'output window, operand 0, single buffered']
    %14 = vsyncpa [#allocation3], 0
    %15 = vsyncpa [#allocation6], 0
    %16 = vsyncpa [#allocation4], 0
    // Predicated region
    $region2: #{tpu_custom_call.1} parent=1 // pred_check
      _
    $region3: #{tpu_custom_call.1} parent=1 // pred_check_branch
      %18 = sbr.rel (0) target = $region5
    $region4: #{tpu_custom_call.1} parent=1 // pred_region
      _
    $region5: #{tpu_custom_call.1} parent=1 // pred_fallthru
      _
    // Predicated region
    $region6: #{tpu_custom_call.1} parent=1 // pred_check
      _
    $region7: #{tpu_custom_call.1} parent=1 // pred_check_branch
      %20 = sbr.rel (0) target = $region9
    $region8: #{tpu_custom_call.1} parent=1 // pred_region
      _
    $region9: #{tpu_custom_call.1} parent=1 // pred_fallthru
      _
    // Predicated region
    $region10: #{tpu_custom_call.1} parent=1 // pred_check
      _
    $region11: #{tpu_custom_call.1} parent=1 // pred_check_branch
      %22 = sbr.rel (0) target = $region13
    $region12: #{tpu_custom_call.1} parent=1 // pred_region
      _
    $region13: #{tpu_custom_call.1} parent=1 // pred_fallthru
      _
    // Predicated region
    $region14: #{tpu_custom_call.1} parent=1 // pred_check
      _
    $region15: #{tpu_custom_call.1} parent=1 // pred_check_branch
      %24 = sbr.rel (0) target = $region17
    $region16: #{tpu_custom_call.1} parent=1 // pred_region
      _
    $region17: #{tpu_custom_call.1} parent=1 // pred_fallthru
      _
    // Predicated region
    $region18: #{tpu_custom_call.1} parent=1 // pred_check
      _
    $region19: #{tpu_custom_call.1} parent=1 // pred_check_branch
      %26 = sbr.rel (0) target = $region21
    $region20: #{tpu_custom_call.1} parent=1 // pred_region
      _
    $region21: #{tpu_custom_call.1} parent=1 // pred_fallthru
      _
    // Predicated region
    $region22: #{tpu_custom_call.1} parent=1 // pred_check
      _
    $region23: #{tpu_custom_call.1} parent=1 // pred_check_branch
      %28 = sbr.rel (0) target = $region25
    $region24: #{tpu_custom_call.1} parent=1 // pred_region
      _
    $region25: #{tpu_custom_call.1} parent=1 // pred_fallthru
      _
    // Predicated region
    $region26: #{tpu_custom_call.1} parent=1 // pred_check
      _
    $region27: #{tpu_custom_call.1} parent=1 // pred_check_branch
      %30 = sbr.rel (0) target = $region29
    $region28: #{tpu_custom_call.1} parent=1 // pred_region
      _
    $region29: #{tpu_custom_call.1} parent=1 // pred_fallthru
      _
    // Predicated region
    $region30: #{tpu_custom_call.1} parent=1 // pred_check
      _
    $region31: #{tpu_custom_call.1} parent=1 // pred_check_branch
      %32 = sbr.rel (0) target = $region33
    $region32: #{tpu_custom_call.1} parent=1 // pred_region
      %34 = vsyncadd [#allocation3], 0
      %s36 = sshll.u32 %s7, 4
      %s37 = int_to_ptr.hbm [resolvable:$true] %s36
      %s38 = sshll.u32 [#allocation2], 4
      %s39 = int_to_ptr.vmem [resolvable:$true] %s38
      %41 = dma.hbm_to_vmem [thread:$0]  %s37, 128, %s39, [#allocation3]
    $region33: #{tpu_custom_call.1} parent=1 // pred_fallthru
      _
    // Predicated region
    $region34: #{tpu_custom_call.1} parent=1 // pred_check
      _
    $region35: #{tpu_custom_call.1} parent=1 // pred_check_branch
      %43 = sbr.rel (0) target = $region37
    $region36: #{tpu_custom_call.1} parent=1 // pred_region
      %45 = vsyncadd [#allocation6], 0
      %s47 = sshll.u32 %s8, 4
      %s48 = int_to_ptr.hbm [resolvable:$true] %s47
      %s49 = sshll.u32 [#allocation5], 4
      %s50 = int_to_ptr.vmem [resolvable:$true] %s49
      %52 = dma.hbm_to_vmem [thread:$0]  %s48, 128, %s50, [#allocation6]
    $region37: #{tpu_custom_call.1} parent=1 // pred_fallthru
      _
    // Predicated region
    $region38: #{tpu_custom_call.1} parent=1 // pred_check
      _
    $region39: #{tpu_custom_call.1} parent=1 // pred_check_branch
      %54 = sbr.rel (0) target = $region41
    $region40: #{tpu_custom_call.1} parent=1 // pred_region
      %56 = dma.done [#allocation3], 128
    $region41: #{tpu_custom_call.1} parent=1 // pred_fallthru
      _
    // Predicated region
    $region42: #{tpu_custom_call.1} parent=1 // pred_check
      _
    $region43: #{tpu_custom_call.1} parent=1 // pred_check_branch
      %58 = sbr.rel (0) target = $region45
    $region44: #{tpu_custom_call.1} parent=1 // pred_region
      %60 = dma.done [#allocation6], 128
    $region45: #{tpu_custom_call.1} parent=1 // pred_fallthru
      _
    %v62 = vld [vmem:[%s0] sm:$0xff]
    %v63 = vld [vmem:[%s0 + $0x8] sm:$0xff]
    %v64 = vmul.f32 %v62, %v62
    %v65 = vmul.f32 %v63, %v63
    %vm66 = vcmask 261120
    %v67 = vsel %vm66, %v64, 0.0
    %68 = vadd.xlane.f32.xlu0 %v67
    %v69 = vpop.xlane.xlu0 %68
    %v70 = vsel %vm66, %v65, 0.0
    %71 = vadd.xlane.f32.xlu0 %v70
    %v72 = vpop.xlane.xlu0 %71
    %v73 = vrcp.pop 32.0
    %v74 = vmul.f32 32.0, %v73
    %v75 = vsub.f32 1.0, %v74
    %v76 = vmul.f32 %v73, %v75
    %v77 = vadd.f32 %v73, %v76
    %vm78 = vweird.f32 %v73
    %v79 = vsel %vm78, %v73, %v77
    %v80 = vmul.f32 %v69, %v79
    %v81 = vmul.f32 %v72, %v79
    %v82 = vadd.f32 %v80, 1.1920929e-07
    %v83 = vadd.f32 %v81, 1.1920929e-07
    %v84 = vrsqrt.pop %v82
    %v85 = vmul.f32 %v84, %v82
    %v86 = vmul.f32 %v85, %v84
    %v87 = vmul.f32 0.5, %v86
    %v88 = vsub.f32 1.5, %v87
    %v89 = vmul.f32 %v84, %v88
    %vm90 = vweird.f32 %v82
    %vm91 = vweird.f32 %v84
    %vm92 = vmor %vm90, %vm91
    %v93 = vsel %vm92, %v84, %v89
    %v94 = vrsqrt.pop %v83
    %v95 = vmul.f32 %v94, %v83
    %v96 = vmul.f32 %v95, %v94
    %v97 = vmul.f32 0.5, %v96
    %v98 = vsub.f32 1.5, %v97
    %v99 = vmul.f32 %v94, %v98
    %vm100 = vweird.f32 %v83
    %vm101 = vweird.f32 %v94
    %vm102 = vmor %vm100, %vm101
    %v103 = vsel %vm102, %v94, %v99
    %v104 = vmul.f32 %v62, %v93
    %v105 = vmul.f32 %v63, %v103
    %v106 = vpack.c.bf16 %v105, %v104
    %v107 = vld [vmem:[%s1] sm:$0xf]
    %v108 = vld [vmem:[%s1 + $0x4] sm:$0xf]
    %v109 = vld [vmem:[%s1 + $0x8] sm:$0xf]
    %v110 = vld [vmem:[%s1 + $0xc] sm:$0xf]
    %v115 = vunpack.c.l.b16 %v107
    %v116 = vunpack.c.l.b16 %v108
    %v117 = vunpack.c.l.b16 %v109
    %v118 = vunpack.c.l.b16 %v110
    %v119 = vpack.c.b16 %v116, %v115
    %v120 = vpack.c.b16 %v118, %v117
    %v124 = vsel %vm66, %v106, 0
    %126 = vmatpush.bf16.msra.mxu0 0
    %127 = vmatpush.bf16.msra.mxu0 0
    %128 = vmatpush.bf16.msra.mxu0 0
    %129 = vmatpush.bf16.msra.mxu0 0
    %130 = vmatpush.bf16.msra.mxu0 0
    %131 = vmatpush.bf16.msra.mxu0 0
    %132 = vmatpush.bf16.msra.mxu0 %v120
    %133 = vmatpush.bf16.msra.mxu0 %v119
    %134 = vmatmul.bf16.gmra.mxu0 %v124
    %v135 = vpop.f32.mrf.mxu0
    %v136 = vadd.f32 0.0, %v135
    %v137 = vpop.f32.mrf.mxu0
    %v138 = vadd.f32 0.0, %v137
    %139 = vdwg.mxu0
    %v140 = vld [vmem:[%s5] sm:$0xff]
    %v141 = vld [vmem:[%s6] sm:$0xff]
    %v142 = vld [vmem:[#allocation2] sm:$0xff]
    %v143 = vld [vmem:[#allocation5] sm:$0xff]
    %v144 = vlaneseq
    %v145 = vshrl.u32 %v144, 7
    %v146 = vlaneseq
    %v147 = vand.u32 %v146, 127
    %vm148 = vcmp.ge.s32.totalorder %v145, %v147
    %v149 = vmul.f32 %v136, %v136
    %v150 = vmul.f32 %v138, %v138
    %vm151 = vcmask 130048
    %v152 = vsel %vm151, %v149, 0.0
    %153 = vadd.xlane.f32.xlu0 %v152
    %v154 = vpop.xlane.xlu0 %153
    %v155 = vsel %vm151, %v150, 0.0
    %156 = vadd.xlane.f32.xlu0 %v155
    %v157 = vpop.xlane.xlu0 %156
    %v158 = vrcp.pop 16.0
    %v159 = vmul.f32 16.0, %v158
    %v160 = vsub.f32 1.0, %v159
    %v161 = vmul.f32 %v158, %v160
    %v162 = vadd.f32 %v158, %v161
    %vm163 = vweird.f32 %v158
    %v164 = vsel %vm163, %v158, %v162
    %v165 = vmul.f32 %v154, %v164
    %v166 = vmul.f32 %v157, %v164
    %v167 = vadd.f32 %v165, 1.1920929e-07
    %v168 = vadd.f32 %v166, 1.1920929e-07
    %v169 = vrsqrt.pop %v167
    %v170 = vmul.f32 %v169, %v167
    %v171 = vmul.f32 %v170, %v169
    %v172 = vmul.f32 0.5, %v171
    %v173 = vsub.f32 1.5, %v172
    %v174 = vmul.f32 %v169, %v173
    %vm175 = vweird.f32 %v167
    %vm176 = vweird.f32 %v169
    %vm177 = vmor %vm175, %vm176
    %v178 = vsel %vm177, %v169, %v174
    %v179 = vrsqrt.pop %v168
    %v180 = vmul.f32 %v179, %v168
    %v181 = vmul.f32 %v180, %v179
    %v182 = vmul.f32 0.5, %v181
    %v183 = vsub.f32 1.5, %v182
    %v184 = vmul.f32 %v179, %v183
    %vm185 = vweird.f32 %v168
    %vm186 = vweird.f32 %v179
    %vm187 = vmor %vm185, %vm186
    %v188 = vsel %vm187, %v179, %v184
    %v189 = vmul.f32 %v136, %v178
    %v190 = vmul.f32 %v138, %v188
    %v191 = vmul.f32 %v189, %v140
    %v192 = vmul.f32 %v190, %v140
    %194 = vrot.lane.b32.xlu0 %v141, 8
    %v195 = vpop.permute.xlu0 %194
    %v197 = vmul.f32 %v189, %v195
    %v198 = vmul.f32 %v190, %v195
    %201 = vrot.lane.b32.xlu0 %v197, 120
    %v202 = vpop.permute.xlu0 %201
    %203 = vrot.lane.b32.xlu0 %v198, 120
    %v204 = vpop.permute.xlu0 %203
    %v207 = vadd.f32 %v191, %v202
    %v208 = vadd.f32 %v192, %v204
    %210 = vrot.lane.b32.xlu0 %v140, 8
    %v211 = vpop.permute.xlu0 %210
    %v213 = vmul.f32 %v189, %v211
    %v214 = vmul.f32 %v190, %v211
    %v215 = vmul.f32 %v189, %v141
    %v216 = vmul.f32 %v190, %v141
    %219 = vrot.lane.b32.xlu0 %v215, 8
    %v220 = vpop.permute.xlu0 %219
    %221 = vrot.lane.b32.xlu0 %v216, 8
    %v222 = vpop.permute.xlu0 %221
    %v225 = vsub.f32 %v213, %v220
    %v226 = vsub.f32 %v214, %v222
    %vm227 = vcmask 64512
    %v228 = vsel %vm227, %v207, %v225
    %v229 = vsel %vm227, %v208, %v226
    %232 = vrot.lane.b32.xlu0 %v149, 96
    %v233 = vpop.permute.xlu0 %232
    %234 = vrot.lane.b32.xlu0 %v150, 96
    %v235 = vpop.permute.xlu0 %234
    %v238 = vsel %vm151, %v233, 0.0
    %239 = vadd.xlane.f32.xlu0 %v238
    %v240 = vpop.xlane.xlu0 %239
    %v241 = vsel %vm151, %v235, 0.0
    %242 = vadd.xlane.f32.xlu0 %v241
    %v243 = vpop.xlane.xlu0 %242
    %v244 = vmul.f32 %v240, %v164
    %v245 = vmul.f32 %v243, %v164
    %v246 = vadd.f32 %v244, 1.1920929e-07
    %v247 = vadd.f32 %v245, 1.1920929e-07
    %v248 = vrsqrt.pop %v246
    %v249 = vmul.f32 %v248, %v246
    %v250 = vmul.f32 %v249, %v248
    %v251 = vmul.f32 0.5, %v250
    %v252 = vsub.f32 1.5, %v251
    %v253 = vmul.f32 %v248, %v252
    %vm254 = vweird.f32 %v246
    %vm255 = vweird.f32 %v248
    %vm256 = vmor %vm254, %vm255
    %v257 = vsel %vm256, %v248, %v253
    %v258 = vrsqrt.pop %v247
    %v259 = vmul.f32 %v258, %v247
    %v260 = vmul.f32 %v259, %v258
    %v261 = vmul.f32 0.5, %v260
    %v262 = vsub.f32 1.5, %v261
    %v263 = vmul.f32 %v258, %v262
    %vm264 = vweird.f32 %v247
    %vm265 = vweird.f32 %v258
    %vm266 = vmor %vm264, %vm265
    %v267 = vsel %vm266, %v258, %v263
    %v268 = vmul.f32 %v136, %v257
    %v269 = vmul.f32 %v138, %v267
    %271 = vrot.lane.b32.xlu0 %v142, 32
    %v272 = vpop.permute.xlu0 %271
    %v274 = vmul.f32 %v268, %v272
    %v275 = vmul.f32 %v269, %v272
    %277 = vrot.lane.b32.xlu0 %v143, 40
    %v278 = vpop.permute.xlu0 %277
    %v280 = vmul.f32 %v268, %v278
    %v281 = vmul.f32 %v269, %v278
    %284 = vrot.lane.b32.xlu0 %v280, 120
    %v285 = vpop.permute.xlu0 %284
    %286 = vrot.lane.b32.xlu0 %v281, 120
    %v287 = vpop.permute.xlu0 %286
    %v290 = vadd.f32 %v274, %v285
    %v291 = vadd.f32 %v275, %v287
    %292 = vrot.lane.b32.xlu0 %v142, 40
    %v293 = vpop.permute.xlu0 %292
    %v295 = vmul.f32 %v268, %v293
    %v296 = vmul.f32 %v269, %v293
    %297 = vrot.lane.b32.xlu0 %v143, 32
    %v298 = vpop.permute.xlu0 %297
    %v300 = vmul.f32 %v268, %v298
    %v301 = vmul.f32 %v269, %v298
    %304 = vrot.lane.b32.xlu0 %v300, 8
    %v305 = vpop.permute.xlu0 %304
    %306 = vrot.lane.b32.xlu0 %v301, 8
    %v307 = vpop.permute.xlu0 %306
    %v310 = vsub.f32 %v295, %v305
    %v311 = vsub.f32 %v296, %v307
    %314 = vrot.lane.b32.xlu0 %v290, 96
    %v315 = vpop.permute.xlu0 %314
    %316 = vrot.lane.b32.xlu0 %v291, 96
    %v317 = vpop.permute.xlu0 %316
    %322 = vrot.lane.b32.xlu0 %v310, 96
    %v323 = vpop.permute.xlu0 %322
    %324 = vrot.lane.b32.xlu0 %v311, 96
    %v325 = vpop.permute.xlu0 %324
    %v328 = vsel %vm227, %v315, %v323
    %v329 = vsel %vm227, %v317, %v325
    %v330 = vpack.c.bf16 %v228, %v228
    %v331 = vpack.c.bf16 %v229, %v229
    %v332 = vpack.c.bf16 %v328, %v328
    %v333 = vpack.c.bf16 %v329, %v329
    %v335 = vsel %vm151, %v330, 0
    %v338 = vsel %vm151, %v332, 0
    %340 = vmatpush.bf16.xpose.msra.mxu0 0
    %341 = vmatpush.bf16.xpose.msra.mxu0 0
    %342 = vmatpush.bf16.xpose.msra.mxu0 0
    %343 = vmatpush.bf16.xpose.msra.mxu0 0
    %344 = vmatpush.bf16.xpose.msra.mxu0 0
    %345 = vmatpush.bf16.xpose.msra.mxu0 0
    %346 = vmatpush.bf16.xpose.msra.mxu0 0
    %347 = vmatpush.bf16.xpose.msra.mxu0 %v338
    %348 = vmatmul.bf16.gmra.mxu0 %v335
    %v349 = vpop.f32.mrf.mxu0
    %v350 = vadd.f32 0.0, %v349
    %v351 = vpop.f32.mrf.mxu0
    %352 = vdwg.mxu0
    %v354 = vsel %vm151, %v331, 0
    %v357 = vsel %vm151, %v333, 0
    %359 = vmatpush.bf16.xpose.msra.mxu0 0
    %360 = vmatpush.bf16.xpose.msra.mxu0 0
    %361 = vmatpush.bf16.xpose.msra.mxu0 0
    %362 = vmatpush.bf16.xpose.msra.mxu0 0
    %363 = vmatpush.bf16.xpose.msra.mxu0 0
    %364 = vmatpush.bf16.xpose.msra.mxu0 0
    %365 = vmatpush.bf16.xpose.msra.mxu0 0
    %366 = vmatpush.bf16.xpose.msra.mxu0 %v357
    %367 = vmatmul.bf16.gmra.mxu0 %v354
    %v368 = vpop.f32.mrf.mxu0
    %v369 = vadd.f32 0.0, %v368
    %v370 = vpop.f32.mrf.mxu0
    %371 = vdwg.mxu0
    %v372 = vsel %vm148, 1, 0
    %vm373 = vcmp.eq.s32.totalorder %v372, 1
    %v374 = vsel %vm373, %v350, -1e+30
    %v375 = vsel %vm373, %v369, -1e+30
    %v376 = vsel %vm227, %v374, -inf
    %377 = vmax.xlane.f32.xlu0 %v376
    %v378 = vpop.xlane.xlu0 %377
    %v379 = vsel %vm227, %v375, -inf
    %380 = vmax.xlane.f32.xlu0 %v379
    %v381 = vpop.xlane.xlu0 %380
    %v382 = vsub.f32 %v374, %v378
    %v383 = vsub.f32 %v375, %v381
    %v384 = vmul.f32 %v382, 1.442695
    %v385 = vpow.pop %v384
    %v386 = vmul.f32 %v383, 1.442695
    %v387 = vpow.pop %v386
    %v388 = vsel %vm227, %v385, 0.0
    %389 = vadd.xlane.f32.xlu0 %v388
    %v390 = vpop.xlane.xlu0 %389
    %v391 = vsel %vm227, %v387, 0.0
    %392 = vadd.xlane.f32.xlu0 %v391
    %v393 = vpop.xlane.xlu0 %392
    %v394 = vrcp.pop %v390
    %v395 = vrcp.pop %v393
    %v396 = vmul.f32 %v385, %v394
    %v397 = vmul.f32 %v387, %v395
    %v398 = vpack.c.bf16 %v396, %v396
    %v399 = vpack.c.bf16 %v397, %v397
    %v400 = vpack.c.bf16 %v136, %v136
    %v401 = vpack.c.bf16 %v138, %v138
    %v403 = vunpack.c.l.b16 %v400
    %v404 = vpack.c.b16 %v403, %v403
    %405 = vrot.lane.b32.xlu0 %v404, 64
    %v406 = vpop.permute.xlu0 %405
    %v408 = vsel %vm227, %v398, 0
    %vm410 = vcmask 1043456
    %v412 = vsel %vm410, %v406, 0
    %414 = vmatpush.bf16.msra.mxu0 0
    %415 = vmatpush.bf16.msra.mxu0 0
    %416 = vmatpush.bf16.msra.mxu0 0
    %417 = vmatpush.bf16.msra.mxu0 0
    %418 = vmatpush.bf16.msra.mxu0 0
    %419 = vmatpush.bf16.msra.mxu0 0
    %420 = vmatpush.bf16.msra.mxu0 0
    %421 = vmatpush.bf16.msra.mxu0 %v412
    %422 = vmatmul.bf16.gmra.mxu0 %v408
    %v423 = vpop.f32.mrf.mxu0
    %v424 = vadd.f32 0.0, %v423
    %v425 = vpop.f32.mrf.mxu0
    %426 = vdwg.mxu0
    %v428 = vunpack.c.l.b16 %v401
    %v429 = vpack.c.b16 %v428, %v428
    %430 = vrot.lane.b32.xlu0 %v429, 64
    %v431 = vpop.permute.xlu0 %430
    %v433 = vsel %vm227, %v399, 0
    %v436 = vsel %vm410, %v431, 0
    %438 = vmatpush.bf16.msra.mxu0 0
    %439 = vmatpush.bf16.msra.mxu0 0
    %440 = vmatpush.bf16.msra.mxu0 0
    %441 = vmatpush.bf16.msra.mxu0 0
    %442 = vmatpush.bf16.msra.mxu0 0
    %443 = vmatpush.bf16.msra.mxu0 0
    %444 = vmatpush.bf16.msra.mxu0 0
    %445 = vmatpush.bf16.msra.mxu0 %v436
    %446 = vmatmul.bf16.gmra.mxu0 %v433
    %v447 = vpop.f32.mrf.mxu0
    %v448 = vadd.f32 0.0, %v447
    %v449 = vpop.f32.mrf.mxu0
    %450 = vdwg.mxu0
    %v451 = vld [vmem:[%s2] sm:$0xf]
    %v452 = vld [vmem:[%s2 + $0x4] sm:$0xf]
    %v453 = vpack.c.bf16 %v448, %v424
    %454 = vrot.lane.b32.xlu0 %v149, 112
    %v455 = vpop.permute.xlu0 %454
    %456 = vrot.lane.b32.xlu0 %v150, 112
    %v457 = vpop.permute.xlu0 %456
    %v460 = vsel %vm151, %v455, 0.0
    %461 = vadd.xlane.f32.xlu0 %v460
    %v462 = vpop.xlane.xlu0 %461
    %v463 = vsel %vm151, %v457, 0.0
    %464 = vadd.xlane.f32.xlu0 %v463
    %v465 = vpop.xlane.xlu0 %464
    %v466 = vmul.f32 %v462, %v164
    %v467 = vmul.f32 %v465, %v164
    %v468 = vadd.f32 %v466, 1.1920929e-07
    %v469 = vadd.f32 %v467, 1.1920929e-07
    %v470 = vrsqrt.pop %v468
    %v471 = vmul.f32 %v470, %v468
    %v472 = vmul.f32 %v471, %v470
    %v473 = vmul.f32 0.5, %v472
    %v474 = vsub.f32 1.5, %v473
    %v475 = vmul.f32 %v470, %v474
    %vm476 = vweird.f32 %v468
    %vm477 = vweird.f32 %v470
    %vm478 = vmor %vm476, %vm477
    %v479 = vsel %vm478, %v470, %v475
    %v480 = vrsqrt.pop %v469
    %v481 = vmul.f32 %v480, %v469
    %v482 = vmul.f32 %v481, %v480
    %v483 = vmul.f32 0.5, %v482
    %v484 = vsub.f32 1.5, %v483
    %v485 = vmul.f32 %v480, %v484
    %vm486 = vweird.f32 %v469
    %vm487 = vweird.f32 %v480
    %vm488 = vmor %vm486, %vm487
    %v489 = vsel %vm488, %v480, %v485
    %v490 = vmul.f32 %v136, %v479
    %v491 = vmul.f32 %v138, %v489
    %492 = vrot.lane.b32.xlu0 %v140, 16
    %v493 = vpop.permute.xlu0 %492
    %v495 = vmul.f32 %v490, %v493
    %v496 = vmul.f32 %v491, %v493
    %497 = vrot.lane.b32.xlu0 %v141, 24
    %v498 = vpop.permute.xlu0 %497
    %v500 = vmul.f32 %v490, %v498
    %v501 = vmul.f32 %v491, %v498
    %504 = vrot.lane.b32.xlu0 %v500, 120
    %v505 = vpop.permute.xlu0 %504
    %506 = vrot.lane.b32.xlu0 %v501, 120
    %v507 = vpop.permute.xlu0 %506
    %v510 = vadd.f32 %v495, %v505
    %v511 = vadd.f32 %v496, %v507
    %512 = vrot.lane.b32.xlu0 %v140, 24
    %v513 = vpop.permute.xlu0 %512
    %v515 = vmul.f32 %v490, %v513
    %v516 = vmul.f32 %v491, %v513
    %517 = vrot.lane.b32.xlu0 %v141, 16
    %v518 = vpop.permute.xlu0 %517
    %v520 = vmul.f32 %v490, %v518
    %v521 = vmul.f32 %v491, %v518
    %524 = vrot.lane.b32.xlu0 %v520, 8
    %v525 = vpop.permute.xlu0 %524
    %526 = vrot.lane.b32.xlu0 %v521, 8
    %v527 = vpop.permute.xlu0 %526
    %v530 = vsub.f32 %v515, %v525
    %v531 = vsub.f32 %v516, %v527
    %534 = vrot.lane.b32.xlu0 %v510, 112
    %v535 = vpop.permute.xlu0 %534
    %536 = vrot.lane.b32.xlu0 %v511, 112
    %v537 = vpop.permute.xlu0 %536
    %542 = vrot.lane.b32.xlu0 %v530, 112
    %v543 = vpop.permute.xlu0 %542
    %544 = vrot.lane.b32.xlu0 %v531, 112
    %v545 = vpop.permute.xlu0 %544
    %v548 = vsel %vm227, %v535, %v543
    %v549 = vsel %vm227, %v537, %v545
    %550 = vrot.lane.b32.xlu0 %v149, 80
    %v551 = vpop.permute.xlu0 %550
    %552 = vrot.lane.b32.xlu0 %v150, 80
    %v553 = vpop.permute.xlu0 %552
    %v556 = vsel %vm151, %v551, 0.0
    %557 = vadd.xlane.f32.xlu0 %v556
    %v558 = vpop.xlane.xlu0 %557
    %v559 = vsel %vm151, %v553, 0.0
    %560 = vadd.xlane.f32.xlu0 %v559
    %v561 = vpop.xlane.xlu0 %560
    %v562 = vmul.f32 %v558, %v164
    %v563 = vmul.f32 %v561, %v164
    %v564 = vadd.f32 %v562, 1.1920929e-07
    %v565 = vadd.f32 %v563, 1.1920929e-07
    %v566 = vrsqrt.pop %v564
    %v567 = vmul.f32 %v566, %v564
    %v568 = vmul.f32 %v567, %v566
    %v569 = vmul.f32 0.5, %v568
    %v570 = vsub.f32 1.5, %v569
    %v571 = vmul.f32 %v566, %v570
    %vm572 = vweird.f32 %v564
    %vm573 = vweird.f32 %v566
    %vm574 = vmor %vm572, %vm573
    %v575 = vsel %vm574, %v566, %v571
    %v576 = vrsqrt.pop %v565
    %v577 = vmul.f32 %v576, %v565
    %v578 = vmul.f32 %v577, %v576
    %v579 = vmul.f32 0.5, %v578
    %v580 = vsub.f32 1.5, %v579
    %v581 = vmul.f32 %v576, %v580
    %vm582 = vweird.f32 %v565
    %vm583 = vweird.f32 %v576
    %vm584 = vmor %vm582, %vm583
    %v585 = vsel %vm584, %v576, %v581
    %v586 = vmul.f32 %v136, %v575
    %v587 = vmul.f32 %v138, %v585
    %588 = vrot.lane.b32.xlu0 %v142, 48
    %v589 = vpop.permute.xlu0 %588
    %v591 = vmul.f32 %v586, %v589
    %v592 = vmul.f32 %v587, %v589
    %593 = vrot.lane.b32.xlu0 %v143, 56
    %v594 = vpop.permute.xlu0 %593
    %v596 = vmul.f32 %v586, %v594
    %v597 = vmul.f32 %v587, %v594
    %600 = vrot.lane.b32.xlu0 %v596, 120
    %v601 = vpop.permute.xlu0 %600
    %602 = vrot.lane.b32.xlu0 %v597, 120
    %v603 = vpop.permute.xlu0 %602
    %v606 = vadd.f32 %v591, %v601
    %v607 = vadd.f32 %v592, %v603
    %608 = vrot.lane.b32.xlu0 %v142, 56
    %v609 = vpop.permute.xlu0 %608
    %v611 = vmul.f32 %v586, %v609
    %v612 = vmul.f32 %v587, %v609
    %613 = vrot.lane.b32.xlu0 %v143, 48
    %v614 = vpop.permute.xlu0 %613
    %v616 = vmul.f32 %v586, %v614
    %v617 = vmul.f32 %v587, %v614
    %620 = vrot.lane.b32.xlu0 %v616, 8
    %v621 = vpop.permute.xlu0 %620
    %622 = vrot.lane.b32.xlu0 %v617, 8
    %v623 = vpop.permute.xlu0 %622
    %v626 = vsub.f32 %v611, %v621
    %v627 = vsub.f32 %v612, %v623
    %630 = vrot.lane.b32.xlu0 %v606, 80
    %v631 = vpop.permute.xlu0 %630
    %632 = vrot.lane.b32.xlu0 %v607, 80
    %v633 = vpop.permute.xlu0 %632
    %638 = vrot.lane.b32.xlu0 %v626, 80
    %v639 = vpop.permute.xlu0 %638
    %640 = vrot.lane.b32.xlu0 %v627, 80
    %v641 = vpop.permute.xlu0 %640
    %v644 = vsel %vm227, %v631, %v639
    %v645 = vsel %vm227, %v633, %v641
    %v646 = vpack.c.bf16 %v548, %v548
    %v647 = vpack.c.bf16 %v549, %v549
    %v648 = vpack.c.bf16 %v644, %v644
    %v649 = vpack.c.bf16 %v645, %v645
    %v651 = vsel %vm151, %v646, 0
    %v654 = vsel %vm151, %v648, 0
    %656 = vmatpush.bf16.xpose.msra.mxu0 0
    %657 = vmatpush.bf16.xpose.msra.mxu0 0
    %658 = vmatpush.bf16.xpose.msra.mxu0 0
    %659 = vmatpush.bf16.xpose.msra.mxu0 0
    %660 = vmatpush.bf16.xpose.msra.mxu0 0
    %661 = vmatpush.bf16.xpose.msra.mxu0 0
    %662 = vmatpush.bf16.xpose.msra.mxu0 0
    %663 = vmatpush.bf16.xpose.msra.mxu0 %v654
    %664 = vmatmul.bf16.gmra.mxu0 %v651
    %v665 = vpop.f32.mrf.mxu0
    %v666 = vadd.f32 0.0, %v665
    %v667 = vpop.f32.mrf.mxu0
    %668 = vdwg.mxu0
    %v670 = vsel %vm151, %v647, 0
    %v673 = vsel %vm151, %v649, 0
    %675 = vmatpush.bf16.xpose.msra.mxu0 0
    %676 = vmatpush.bf16.xpose.msra.mxu0 0
    %677 = vmatpush.bf16.xpose.msra.mxu0 0
    %678 = vmatpush.bf16.xpose.msra.mxu0 0
    %679 = vmatpush.bf16.xpose.msra.mxu0 0
    %680 = vmatpush.bf16.xpose.msra.mxu0 0
    %681 = vmatpush.bf16.xpose.msra.mxu0 0
    %682 = vmatpush.bf16.xpose.msra.mxu0 %v673
    %683 = vmatmul.bf16.gmra.mxu0 %v670
    %v684 = vpop.f32.mrf.mxu0
    %v685 = vadd.f32 0.0, %v684
    %v686 = vpop.f32.mrf.mxu0
    %687 = vdwg.mxu0
    %v688 = vsel %vm373, %v666, -1e+30
    %v689 = vsel %vm373, %v685, -1e+30
    %v690 = vsel %vm227, %v688, -inf
    %691 = vmax.xlane.f32.xlu0 %v690
    %v692 = vpop.xlane.xlu0 %691
    %v693 = vsel %vm227, %v689, -inf
    %694 = vmax.xlane.f32.xlu0 %v693
    %v695 = vpop.xlane.xlu0 %694
    %v696 = vsub.f32 %v688, %v692
    %v697 = vsub.f32 %v689, %v695
    %v698 = vmul.f32 %v696, 1.442695
    %v699 = vpow.pop %v698
    %v700 = vmul.f32 %v697, 1.442695
    %v701 = vpow.pop %v700
    %v702 = vsel %vm227, %v699, 0.0
    %703 = vadd.xlane.f32.xlu0 %v702
    %v704 = vpop.xlane.xlu0 %703
    %v705 = vsel %vm227, %v701, 0.0
    %706 = vadd.xlane.f32.xlu0 %v705
    %v707 = vpop.xlane.xlu0 %706
    %v708 = vrcp.pop %v704
    %v709 = vrcp.pop %v707
    %v710 = vmul.f32 %v699, %v708
    %v711 = vmul.f32 %v701, %v709
    %v712 = vpack.c.bf16 %v710, %v710
    %v713 = vpack.c.bf16 %v711, %v711
    %714 = vrot.lane.b32.xlu0 %v404, 48
    %v715 = vpop.permute.xlu0 %714
    %v717 = vsel %vm227, %v712, 0
    %v720 = vsel %vm410, %v715, 0
    %722 = vmatpush.bf16.msra.mxu0 0
    %723 = vmatpush.bf16.msra.mxu0 0
    %724 = vmatpush.bf16.msra.mxu0 0
    %725 = vmatpush.bf16.msra.mxu0 0
    %726 = vmatpush.bf16.msra.mxu0 0
    %727 = vmatpush.bf16.msra.mxu0 0
    %728 = vmatpush.bf16.msra.mxu0 0
    %729 = vmatpush.bf16.msra.mxu0 %v720
    %730 = vmatmul.bf16.gmra.mxu0 %v717
    %v731 = vpop.f32.mrf.mxu0
    %v732 = vadd.f32 0.0, %v731
    %v733 = vpop.f32.mrf.mxu0
    %734 = vdwg.mxu0
    %735 = vrot.lane.b32.xlu0 %v429, 48
    %v736 = vpop.permute.xlu0 %735
    %v738 = vsel %vm227, %v713, 0
    %v741 = vsel %vm410, %v736, 0
    %743 = vmatpush.bf16.msra.mxu0 0
    %744 = vmatpush.bf16.msra.mxu0 0
    %745 = vmatpush.bf16.msra.mxu0 0
    %746 = vmatpush.bf16.msra.mxu0 0
    %747 = vmatpush.bf16.msra.mxu0 0
    %748 = vmatpush.bf16.msra.mxu0 0
    %749 = vmatpush.bf16.msra.mxu0 0
    %750 = vmatpush.bf16.msra.mxu0 %v741
    %751 = vmatmul.bf16.gmra.mxu0 %v738
    %v752 = vpop.f32.mrf.mxu0
    %v753 = vadd.f32 0.0, %v752
    %v754 = vpop.f32.mrf.mxu0
    %755 = vdwg.mxu0
    %v756 = vld [vmem:[%s2 + $0x8] sm:$0xf]
    %v757 = vld [vmem:[%s2 + $0xc] sm:$0xf]
    %v758 = vpack.c.bf16 %v753, %v732
    %v761 = vunpack.c.l.b16 %v756
    %v762 = vunpack.c.l.b16 %v757
    %v763 = vpack.c.b16 %v762, %v761
    %v766 = vsel %vm151, %v758, 0
    %768 = vmatpush.bf16.msra.mxu0 0
    %769 = vmatpush.bf16.msra.mxu0 0
    %770 = vmatpush.bf16.msra.mxu0 0
    %771 = vmatpush.bf16.msra.mxu0 0
    %772 = vmatpush.bf16.msra.mxu0 0
    %773 = vmatpush.bf16.msra.mxu0 0
    %774 = vmatpush.bf16.msra.mxu0 0
    %775 = vmatpush.bf16.msra.mxu0 %v763
    %776 = vmatmul.bf16.gmra.mxu0 %v766
    %v777 = vpop.f32.mrf.mxu0
    %v778 = vadd.f32 0.0, %v777
    %v779 = vpop.f32.mrf.mxu0
    %v780 = vadd.f32 0.0, %v779
    %781 = vdwg.mxu0
    %v784 = vunpack.c.l.b16 %v451
    %v785 = vunpack.c.l.b16 %v452
    %v786 = vpack.c.b16 %v785, %v784
    %v789 = vsel %vm151, %v453, 0
    %791 = vmatpush.bf16.msra.mxu0 0
    %792 = vmatpush.bf16.msra.mxu0 0
    %793 = vmatpush.bf16.msra.mxu0 0
    %794 = vmatpush.bf16.msra.mxu0 0
    %795 = vmatpush.bf16.msra.mxu0 0
    %796 = vmatpush.bf16.msra.mxu0 0
    %797 = vmatpush.bf16.msra.mxu0 0
    %798 = vmatpush.bf16.msra.mxu0 %v786
    %799 = vmatmul.bf16.gmra.mxu0 %v789
    %v800 = vpop.f32.mrf.mxu0
    %v801 = vadd.f32 %v778, %v800
    %v802 = vpop.f32.mrf.mxu0
    %v803 = vadd.f32 %v780, %v802
    %804 = vdwg.mxu0
    %v805 = vadd.f32 %v62, %v801
    %v806 = vadd.f32 %v63, %v803
    %v807 = vmul.f32 %v805, %v805
    %v808 = vmul.f32 %v806, %v806
    %v809 = vsel %vm66, %v807, 0.0
    %810 = vadd.xlane.f32.xlu0 %v809
    %v811 = vpop.xlane.xlu0 %810
    %v812 = vsel %vm66, %v808, 0.0
    %813 = vadd.xlane.f32.xlu0 %v812
    %v814 = vpop.xlane.xlu0 %813
    %v815 = vmul.f32 %v811, %v79
    %v816 = vmul.f32 %v814, %v79
    %v817 = vadd.f32 %v815, 1.1920929e-07
    %v818 = vadd.f32 %v816, 1.1920929e-07
    %v819 = vrsqrt.pop %v817
    %v820 = vmul.f32 %v819, %v817
    %v821 = vmul.f32 %v820, %v819
    %v822 = vmul.f32 0.5, %v821
    %v823 = vsub.f32 1.5, %v822
    %v824 = vmul.f32 %v819, %v823
    %vm825 = vweird.f32 %v817
    %vm826 = vweird.f32 %v819
    %vm827 = vmor %vm825, %vm826
    %v828 = vsel %vm827, %v819, %v824
    %v829 = vrsqrt.pop %v818
    %v830 = vmul.f32 %v829, %v818
    %v831 = vmul.f32 %v830, %v829
    %v832 = vmul.f32 0.5, %v831
    %v833 = vsub.f32 1.5, %v832
    %v834 = vmul.f32 %v829, %v833
    %vm835 = vweird.f32 %v818
    %vm836 = vweird.f32 %v829
    %vm837 = vmor %vm835, %vm836
    %v838 = vsel %vm837, %v829, %v834
    %v839 = vmul.f32 %v805, %v828
    %v840 = vmul.f32 %v806, %v838
    %v841 = vpack.c.bf16 %v840, %v839
    %v842 = vld [vmem:[%s3] sm:$0xf]
    %v843 = vld [vmem:[%s3 + $0x4] sm:$0xf]
    %v844 = vld [vmem:[%s3 + $0x8] sm:$0xf]
    %v845 = vld [vmem:[%s3 + $0xc] sm:$0xf]
    %v850 = vunpack.c.l.b16 %v842
    %v851 = vunpack.c.l.b16 %v843
    %v852 = vunpack.c.l.b16 %v844
    %v853 = vunpack.c.l.b16 %v845
    %v854 = vpack.c.b16 %v851, %v850
    %v855 = vpack.c.b16 %v853, %v852
    %v859 = vsel %vm66, %v841, 0
    %861 = vmatpush.bf16.msra.mxu0 0
    %862 = vmatpush.bf16.msra.mxu0 0
    %863 = vmatpush.bf16.msra.mxu0 0
    %864 = vmatpush.bf16.msra.mxu0 0
    %865 = vmatpush.bf16.msra.mxu0 0
    %866 = vmatpush.bf16.msra.mxu0 0
    %867 = vmatpush.bf16.msra.mxu0 %v855
    %868 = vmatpush.bf16.msra.mxu0 %v854
    %869 = vmatmul.bf16.gmra.mxu0 %v859
    %v870 = vpop.f32.mrf.mxu0
    %v871 = vadd.f32 0.0, %v870
    %v872 = vpop.f32.mrf.mxu0
    %v873 = vadd.f32 0.0, %v872
    %874 = vdwg.mxu0
    %v875 = vmax.f32 %v871, 0.0
    %v876 = vmax.f32 %v873, 0.0
    %v877 = vmul.f32 %v875, %v875
    %v878 = vmul.f32 %v876, %v876
    %v879 = vpack.c.bf16 %v878, %v877
    %v880 = vld [vmem:[%s4] sm:$0xf]
    %v881 = vld [vmem:[%s4 + $0x4] sm:$0xf]
    %v882 = vld [vmem:[%s4 + $0x8] sm:$0xf]
    %v883 = vld [vmem:[%s4 + $0xc] sm:$0xf]
    %v884 = vld [vmem:[%s4 + $0x10] sm:$0xf]
    %v885 = vld [vmem:[%s4 + $0x14] sm:$0xf]
    %v886 = vld [vmem:[%s4 + $0x18] sm:$0xf]
    %v887 = vld [vmem:[%s4 + $0x1c] sm:$0xf]
    %v888 = vld [vmem:[%s4 + $0x20] sm:$0xf]
    %v889 = vld [vmem:[%s4 + $0x24] sm:$0xf]
    %v890 = vld [vmem:[%s4 + $0x28] sm:$0xf]
    %v891 = vld [vmem:[%s4 + $0x2c] sm:$0xf]
    %v892 = vld [vmem:[%s4 + $0x30] sm:$0xf]
    %v893 = vld [vmem:[%s4 + $0x34] sm:$0xf]
    %v894 = vld [vmem:[%s4 + $0x38] sm:$0xf]
    %v895 = vld [vmem:[%s4 + $0x3c] sm:$0xf]
    %v912 = vunpack.c.l.b16 %v880
    %v913 = vunpack.c.l.b16 %v881
    %v914 = vunpack.c.l.b16 %v882
    %v915 = vunpack.c.l.b16 %v883
    %v916 = vunpack.c.l.b16 %v884
    %v917 = vunpack.c.l.b16 %v885
    %v918 = vunpack.c.l.b16 %v886
    %v919 = vunpack.c.l.b16 %v887
    %v920 = vunpack.c.l.b16 %v888
    %v921 = vunpack.c.l.b16 %v889
    %v922 = vunpack.c.l.b16 %v890
    %v923 = vunpack.c.l.b16 %v891
    %v924 = vunpack.c.l.b16 %v892
    %v925 = vunpack.c.l.b16 %v893
    %v926 = vunpack.c.l.b16 %v894
    %v927 = vunpack.c.l.b16 %v895
    %v928 = vpack.c.b16 %v913, %v912
    %v929 = vpack.c.b16 %v915, %v914
    %v930 = vpack.c.b16 %v917, %v916
    %v931 = vpack.c.b16 %v919, %v918
    %v932 = vpack.c.b16 %v921, %v920
    %v933 = vpack.c.b16 %v923, %v922
    %v934 = vpack.c.b16 %v925, %v924
    %v935 = vpack.c.b16 %v927, %v926
    %944 = vmatpush.bf16.msra.mxu0 %v935
    %945 = vmatpush.bf16.msra.mxu0 %v934
    %946 = vmatpush.bf16.msra.mxu0 %v933
    %947 = vmatpush.bf16.msra.mxu0 %v932
    %948 = vmatpush.bf16.msra.mxu0 %v931
    %949 = vmatpush.bf16.msra.mxu0 %v930
    %950 = vmatpush.bf16.msra.mxu0 %v929
    %951 = vmatpush.bf16.msra.mxu0 %v928
    %952 = vmatmul.bf16.gmra.mxu0 %v879
    %v953 = vpop.f32.mrf.mxu0
    %v954 = vadd.f32 0.0, %v953
    %v955 = vpop.f32.mrf.mxu0
    %v956 = vadd.f32 0.0, %v955
    %957 = vdwg.mxu0
    %v958 = vadd.f32 %v805, %v954
    %v959 = vadd.f32 %v806, %v956
    %960 = vst.msk [vmem:[#allocation7] sm:$0xff] %vm66, %v958
    %961 = vst.msk [vmem:[#allocation7 + $0x8] sm:$0xff] %vm66, %v959
    // Predicated region
    $region46: #{tpu_custom_call.1} parent=1 // pred_check
      _
    $region47: #{tpu_custom_call.1} parent=1 // pred_check_branch
      %963 = sbr.rel (0) target = $region49
    $region48: #{tpu_custom_call.1} parent=1 // pred_region
      %965 = vsyncadd [#allocation4], 0
      %s966 = sshll.u32 [#allocation7], 4
      %s967 = int_to_ptr.vmem [resolvable:$true] %s966
      %s968 = sshll.u32 %s9, 4
      %s969 = int_to_ptr.hbm [resolvable:$true] %s968
      %974 = dma.vmem_to_hbm [thread:$0]  %s967, 256, %s969, [#allocation4], 128, 128, 8
    $region49: #{tpu_custom_call.1} parent=1 // pred_fallthru
      _
    // Predicated region
    $region50: #{tpu_custom_call.1} parent=1 // pred_check
      _
    $region51: #{tpu_custom_call.1} parent=1 // pred_check_branch
      %976 = sbr.rel (0) target = $region53
    $region52: #{tpu_custom_call.1} parent=1 // pred_region
      %978 = dma.done [#allocation4], 256
    $region53: #{tpu_custom_call.1} parent=1 // pred_fallthru
      _
    %979 = vsyncpa [#allocation3], 1
    %980 = vsyncpa [#allocation6], 1
    %981 = vsyncpa [#allocation4], 1

</llo_original>
